<compile_context>
chip_gen: v7x
topology: tpu7x:2x2x1
jax: 0.10.0
libtpu: 0.0.40
codegen_flags: <defaults>
</compile_context>

<pallas_src>
import functools

import jax
import jax.numpy as jnp
from jax.experimental import pallas as pl
from jax.experimental.pallas import tpu as pltpu


def _round_up(x, m):
    return ((x + m - 1) // m) * m


def _vmem_capacity_bytes(default=64 << 20):
    """Physical VMEM per TensorCore; conservative (v7x) fallback."""
    try:
        info = pltpu.get_tpu_info()
        return int(getattr(info, "vmem_capacity_bytes", default))
    except Exception:
        return default


def _layernorm_kernel(x_ref, w_ref, *rest, eps, inv_c, n_pad, has_bias):
    # x_ref: (tile_rows, Cp); w_ref (and optional b_ref): (1, Cp); o_ref: (tile_rows, Cp)
    if has_bias:
        b_ref, o_ref = rest
    else:
        (o_ref,) = rest

    x = x_ref[...].astype(jnp.float32)
    w = w_ref[...].astype(jnp.float32)

    # Padded lanes are zero, so the sum over Cp equals the sum over the real C.
    mean = jnp.sum(x, axis=-1, keepdims=True) * inv_c
    xc = x - mean
    ss = jnp.sum(xc * xc, axis=-1, keepdims=True)
    if n_pad:
        # Each of the n_pad zero-padded lanes contributed (0 - mean)^2 = mean^2;
        # subtract exactly so var matches the unpadded (biased) variance.
        ss = ss - n_pad * (mean * mean)
    var = ss * inv_c
    inv = jax.lax.rsqrt(var + eps)  # EUP slot, effectively free

    y = xc * inv * w
    if has_bias:
        y = y + b_ref[...].astype(jnp.float32)
    o_ref[...] = y.astype(o_ref.dtype)


def _pick_tile_rows(rows, c, itemsize, *, min_grid_steps=8, target_block_bytes=4 << 20):
    """Row tile that (a) keeps >= min_grid_steps grid steps when rows allow,
    (b) stays near a ~4 MiB input block, (c) fits a generation-aware VMEM budget
    including the f32 temporaries."""
    # Sublane packing factor: 8 rows for 4-byte dtypes, 16 for bf16, 32 for int8.
    pack = 8 * max(1, 4 // itemsize)
    if rows <= pack:
        return rows  # full-extent block is always legal

    phys = _vmem_capacity_bytes()
    vmem_budget = min(phys // 4, 24 << 20)

    # Per row: double-buffered input + output blocks, plus ~3 f32 tile-sized temps.
    bytes_per_row = 2 * 2 * c * itemsize + 3 * c * 4
    max_rows_vmem = max(pack, vmem_budget // bytes_per_row)
    # Right-sized block (~4 MiB input) rather than maxing toward the budget.
    max_rows_block = max(pack, target_block_bytes // (c * itemsize))
    # Guarantee a multi-step grid (pipelining; megacore sharding on v7x).
    cap_for_grid = max(pack, _round_up((rows + min_grid_steps - 1) // min_grid_steps, pack))

    tile = min(max_rows_vmem, max_rows_block, cap_for_grid)
    tile = max(pack, (tile // pack) * pack)
    return tile


def layer_norm_pallas(x, weight, bias=None, *, eps=1e-5, tile_rows=None):
    """x: (..., C); weight: (C,); bias: (C,) or None. Returns same shape/dtype as x."""
    orig_shape = x.shape
    C = orig_shape[-1]
    rows = 1
    for d in orig_shape[:-1]:
        rows *= d
    x2 = x.reshape(rows, C)

    # Lane-density guard: pad C to a multiple of 128 so output stores are unmasked.
    n_pad = (-C) % 128
    Cp = C + n_pad
    if n_pad:
        x2 = jnp.pad(x2, ((0, 0), (0, n_pad)))
        weight_p = jnp.pad(weight, (0, n_pad))
        bias_p = jnp.pad(bias, (0, n_pad)) if bias is not None else None
    else:
        weight_p = weight
        bias_p = bias

    has_bias = bias is not None
    w2 = weight_p.reshape(1, Cp)
    operands = [x2, w2]
    if has_bias:
        operands.append(bias_p.reshape(1, Cp))

    itemsize = jnp.dtype(x.dtype).itemsize
    if tile_rows is None:
        tile_rows = _pick_tile_rows(rows, Cp, itemsize)
    tile_rows = max(1, min(tile_rows, rows))

    grid = (pl.cdiv(rows, tile_rows),)  # ragged last block handled by Pallas

    in_specs = [
        pl.BlockSpec((tile_rows, Cp), lambda i: (i, 0)),
        pl.BlockSpec((1, Cp), lambda i: (0, 0)),  # weight stays VMEM-resident
    ]
    if has_bias:
        in_specs.append(pl.BlockSpec((1, Cp), lambda i: (0, 0)))  # bias VMEM-resident

    # Explicit VMEM limit covering the true footprint (in/out double-buffers +
    # f32 temps + params), clamped to 3/4 of physical VMEM (<= 48 MiB on v7x).
    bytes_per_row = 2 * 2 * Cp * itemsize + 3 * Cp * 4
    footprint = tile_rows * bytes_per_row + 4 * Cp * 4
    phys = _vmem_capacity_bytes()
    vmem_limit = int(min(phys * 3 // 4, max(2 * footprint, 32 << 20)))

    n_param_ops = 2 if has_bias else 1
    cost = pl.CostEstimate(
        flops=10 * rows * Cp,
        transcendentals=rows,
        bytes_accessed=2 * rows * Cp * itemsize
        + n_param_ops * Cp * jnp.dtype(weight.dtype).itemsize,
    )

    kernel = functools.partial(
        _layernorm_kernel,
        eps=float(eps),
        inv_c=1.0 / float(C),
        n_pad=int(n_pad),
        has_bias=has_bias,
    )

    out = pl.pallas_call(
        kernel,
        out_shape=jax.ShapeDtypeStruct((rows, Cp), x.dtype),
        grid_spec=pltpu.PrefetchScalarGridSpec(
            num_scalar_prefetch=0,
            grid=grid,
            in_specs=in_specs,
            out_specs=pl.BlockSpec((tile_rows, Cp), lambda i: (i, 0)),
        ),
        compiler_params=pltpu.CompilerParams(
            dimension_semantics=("parallel",),
            vmem_limit_bytes=vmem_limit,
        ),
        cost_estimate=cost,
    )(*operands)

    if n_pad:
        out = out[:, :C]  # one extra HBM pass only on non-lane-aligned C
    return out.reshape(orig_shape)


if __name__ == "__main__":
    key = jax.random.PRNGKey(0)
    # Small but lane-dense demo shape (C multiple of 128 keeps vst unmasked).
    B, T, C = 2, 8, 128
    x = jax.random.normal(key, (B, T, C), dtype=jnp.float32)

    # Deterministic parameter init matching LayerNorm.__init__ (weight=1, bias=0).
    weight = jnp.ones((C,), dtype=jnp.float32)
    bias = jnp.zeros((C,), dtype=jnp.float32)

    y = jax.block_until_ready(layer_norm_pallas(x, weight, bias))
    # bias=None path (compile-time specialization, no zeros operand).
    y_nobias = jax.block_until_ready(layer_norm_pallas(x, weight, None))

    # Pure-JAX reference (biased variance, eps=1e-5) matching F.layer_norm.
    mean = jnp.mean(x, axis=-1, keepdims=True)
    var = jnp.mean((x - mean) ** 2, axis=-1, keepdims=True)
    ref = (x - mean) * jax.lax.rsqrt(var + 1e-5) * weight + bias

    assert y.shape == x.shape and y.dtype == x.dtype
    assert jnp.allclose(y, ref, atol=1e-5, rtol=1e-5)
    assert jnp.allclose(y_nobias, ref, atol=1e-5, rtol=1e-5)  # bias is zeros here

    # Non-lane-aligned C exercises the host-side pad + exact variance correction.
    C2 = 100
    x2 = jax.random.normal(jax.random.PRNGKey(1), (B, T, C2), dtype=jnp.float32)
    w2 = jnp.ones((C2,), dtype=jnp.float32)
    b2 = jnp.zeros((C2,), dtype=jnp.float32)
    y2 = jax.block_until_ready(layer_norm_pallas(x2, w2, b2))
    m2 = jnp.mean(x2, axis=-1, keepdims=True)
    v2 = jnp.mean((x2 - m2) ** 2, axis=-1, keepdims=True)
    ref2 = (x2 - m2) * jax.lax.rsqrt(v2 + 1e-5) * w2 + b2
    assert jnp.allclose(y2, ref2, atol=1e-4, rtol=1e-4)

    print("KERNEL_OK")
</pallas_src>

<mosaic_0001>
module attributes {stable_mosaic.version = 11 : i64} {
  func.func @_layernorm_kernel(%arg0: i32, %arg1: memref<8x128xf32, #tpu.memory_space<vmem>>, %arg2: memref<1x128xf32, #tpu.memory_space<vmem>>, %arg3: memref<1x128xf32, #tpu.memory_space<vmem>>, %arg4: memref<8x128xf32, #tpu.memory_space<vmem>>) attributes {dimension_semantics = [#tpu.dimension_semantics<parallel>], iteration_bounds = array<i64: 2>, scalar_prefetch = 0 : i64, scratch_operands = 0 : i64, tpu.core_type = #tpu.core_type<tc>, window_params = [{transform_indices = @transform_0, window_bounds = array<i64: 8, 128>}, {pipeline_mode = #tpu.pipeline_mode<synchronous>, transform_indices = @transform_1, window_bounds = array<i64: 1, 128>}, {pipeline_mode = #tpu.pipeline_mode<synchronous>, transform_indices = @transform_2, window_bounds = array<i64: 1, 128>}, {transform_indices = @transform_3, window_bounds = array<i64: 8, 128>}]} {
    %c0 = arith.constant 0 : index
    %c0_0 = arith.constant 0 : index
    %0 = vector.load %arg1[%c0, %c0_0] : memref<8x128xf32, #tpu.memory_space<vmem>>, vector<8x128xf32>
    %c0_1 = arith.constant 0 : index
    %c0_2 = arith.constant 0 : index
    %1 = vector.load %arg2[%c0_1, %c0_2] : memref<1x128xf32, #tpu.memory_space<vmem>>, vector<1x128xf32>
    %cst = arith.constant dense<0.000000e+00> : vector<8xf32>
    %2 = vector.multi_reduction <add>, %0, %cst [1] : vector<8x128xf32> to vector<8xf32>
    %3 = vector.shape_cast %2 : vector<8xf32> to vector<8x1xf32>
    %cst_3 = arith.constant 7.812500e-03 : f32
    %4 = vector.broadcast %cst_3 : f32 to vector<8x1xf32>
    %5 = arith.mulf %3, %4 : vector<8x1xf32>
    %6 = vector.broadcast %5 : vector<8x1xf32> to vector<8x128xf32>
    %7 = arith.subf %0, %6 : vector<8x128xf32>
    %8 = arith.mulf %7, %7 : vector<8x128xf32>
    %cst_4 = arith.constant dense<0.000000e+00> : vector<8xf32>
    %9 = vector.multi_reduction <add>, %8, %cst_4 [1] : vector<8x128xf32> to vector<8xf32>
    %10 = vector.shape_cast %9 : vector<8xf32> to vector<8x1xf32>
    %cst_5 = arith.constant 7.812500e-03 : f32
    %11 = vector.broadcast %cst_5 : f32 to vector<8x1xf32>
    %12 = arith.mulf %10, %11 : vector<8x1xf32>
    %cst_6 = arith.constant 9.99999974E-6 : f32
    %13 = vector.broadcast %cst_6 : f32 to vector<8x1xf32>
    %14 = arith.addf %12, %13 : vector<8x1xf32>
    %15 = math.rsqrt %14 : vector<8x1xf32>
    %16 = vector.broadcast %15 : vector<8x1xf32> to vector<8x128xf32>
    %17 = arith.mulf %7, %16 : vector<8x128xf32>
    %18 = vector.broadcast %1 : vector<1x128xf32> to vector<8x128xf32>
    %19 = arith.mulf %17, %18 : vector<8x128xf32>
    %c0_7 = arith.constant 0 : index
    %c0_8 = arith.constant 0 : index
    %20 = vector.load %arg3[%c0_7, %c0_8] : memref<1x128xf32, #tpu.memory_space<vmem>>, vector<1x128xf32>
    %21 = vector.broadcast %20 : vector<1x128xf32> to vector<8x128xf32>
    %22 = arith.addf %19, %21 : vector<8x128xf32>
    %c0_9 = arith.constant 0 : index
    %c0_10 = arith.constant 0 : index
    %23 = vector.load %arg4[%c0_9, %c0_10] : memref<8x128xf32, #tpu.memory_space<vmem>>, vector<8x128xf32>
    tpu.vector_store %arg4[%c0_9, %c0_10], %22 {strides = array<i32>} : memref<8x128xf32, #tpu.memory_space<vmem>>, vector<8x128xf32>,
    return
  }
  func.func @transform_0(%arg0: i32) -> (i32, i32) {
    %c0_i32 = arith.constant 0 : i32
    %c0_i32_0 = arith.constant 0 : i32
    return %arg0, %c0_i32 : i32, i32
  }
  func.func @transform_1(%arg0: i32) -> (i32, i32) {
    %c0_i32 = arith.constant 0 : i32
    %c0_i32_0 = arith.constant 0 : i32
    %c0_i32_1 = arith.constant 0 : i32
    return %c0_i32, %c0_i32_0 : i32, i32
  }
  func.func @transform_2(%arg0: i32) -> (i32, i32) {
    %c0_i32 = arith.constant 0 : i32
    %c0_i32_0 = arith.constant 0 : i32
    %c0_i32_1 = arith.constant 0 : i32
    return %c0_i32, %c0_i32_0 : i32, i32
  }
  func.func @transform_3(%arg0: i32) -> (i32, i32) {
    %c0_i32 = arith.constant 0 : i32
    %c0_i32_0 = arith.constant 0 : i32
    return %arg0, %c0_i32 : i32, i32
  }
}

</mosaic_0001>

<llo_original>
// kernel: tpu_custom_call.1
$region0: #{tpu_custom_call.1}
  #allocation0 [shape = 'u32[]', space=smem, size = 0x4, offset = 0x4, fixed_abs, tag = 'smem constant byte address 0x4 - core index']
  #allocation1 [shape = 'u32[144,128]{1,0:T(1,128)}', space=vmem, size = 0x12000, scoped, tag = 'internal scratch']
  %s0 = inlined_call_operand.hbm [shape: f32[16,128], index: 0, kind: input, shape index: {}]
  %s1 = inlined_call_operand.vmem [shape: f32[1,128], index: 1, kind: input, shape index: {}]
  %s2 = inlined_call_operand.vmem [shape: f32[1,128], index: 2, kind: input, shape index: {}]
  %s3 = inlined_call_operand.hbm [shape: f32[16,128], index: 3, kind: output, shape index: {}]
  %s4 = sld [smem:[#allocation0]]
  $region49: #{tpu_custom_call.1} parent=0
    _
  %s6 = ssub.s32 1, %s4
  %s7 = scalar_select 0, %s6, %s4
  $region1: #{tpu_custom_call.1} parent=0
    #allocation2 [shape = 'u8[8192]{0}', space=vmem, size = 0x2000, scoped, tag = 'input window, operand 0']
    #allocation3 [shape = 's32[2]{0}', space=sflag, size = 0x8, scoped, tag = 'scoped memory for tpu_custom_call.1']
    #allocation4 [shape = 's32[2]{0}', space=sflag, size = 0x8, scoped, tag = 'scoped memory for tpu_custom_call.1']
    #allocation5 [shape = 'u8[8192]{0}', space=vmem, size = 0x2000, scoped, tag = 'output window, operand 0']
    %8 = vsyncpa [#allocation3], 0
    %s9 = scalar_lea.sflag [#allocation3], 1
    %10 = vsyncpa %s9, 0
    %11 = vsyncpa [#allocation4], 0
    %s12 = scalar_lea.sflag [#allocation4], 1
    %13 = vsyncpa %s12, 0
    loop: start=0, step=1, limit=4
    $region2: #{tpu_custom_call.1} parent=1 // loop_pre_header
      _
    $region3: #{tpu_custom_call.1} parent=1 // loop_header
      %s15 = sphi 0, %s19
      %p16 = scmp.ge.s32.totalorder %s15, 4
      %s25 = sphi 0, %s27
      %s28 = sphi 0, %s25
      %s29 = sphi 0, %s28
      %s45 = sphi 0, %s29
      %s49 = sphi 0, %s49
      %s51 = sphi 0, %s49
      %s52 = sphi 0, %s51
      %s66 = sphi 0, %s52
      %s70 = sphi 0, %s70
      %s72 = sphi 0, %s70
      %s73 = sphi 0, %s72
      %s87 = sphi 0, %s73
      %s93 = sphi 0, %s95
      %s96 = sphi 0, %s93
      %s97 = sphi 0, %s96
      %s113 = sphi 0, %s97
    $region4: #{tpu_custom_call.1} parent=1 // loop_header_branch
      %18 = sbr.rel (%p16) target = $region8
    $region5: #{tpu_custom_call.1} parent=1 // loop_body
      %s20 = ssub.s32 %s15, 1
      %s21 = ssub.s32 %s15, 2
      %s22 = sadd.s32 %s15, 1
      %s23 = ssub.s32 %s15, %s22
      %p24 = scmp.eq.s32.totalorder %s23, 0
      %s26 = sadd.s32 %s25, 1
      %s27 = scalar_select %p24, %s25, %s26
      %p30 = pneg %p24
      %p31 = scmp.eq.s32.totalorder %s15, 1
      %p32 = por %p30, %p31
      %p33 = scmp.ne.s32.totalorder %s25, %s28
      %p34 = scmp.eq.s32.totalorder %s15, 0
      %p35 = por %p33, %p34
      %p36 = scmp.ne.s32.totalorder %s25, %s28
      %p37 = scmp.eq.s32.totalorder %s20, 1
      %p38 = por %p36, %p37
      %p39 = scmp.ne.s32.totalorder %s28, %s29
      %p40 = scmp.eq.s32.totalorder %s20, 0
      %p41 = por %p39, %p40
      %p42 = scmp.ne.s32.totalorder %s28, %s29
      %p43 = scmp.eq.s32.totalorder %s21, 1
      %p44 = por %p42, %p43
      %p46 = scmp.ne.s32.totalorder %s29, %s45
      %p47 = scmp.eq.s32.totalorder %s21, 0
      %p48 = por %p46, %p47
      %s50 = sadd.s32 %s49, 1
      %p53 = scmp.eq.s32.totalorder %s15, 1
      %p54 = scmp.ne.s32.totalorder %s49, %s51
      %p55 = scmp.eq.s32.totalorder %s15, 0
      %p56 = por %p54, %p55
      %p57 = scmp.ne.s32.totalorder %s49, %s51
      %p58 = scmp.eq.s32.totalorder %s20, 1
      %p59 = por %p57, %p58
      %p60 = scmp.ne.s32.totalorder %s51, %s52
      %p61 = scmp.eq.s32.totalorder %s20, 0
      %p62 = por %p60, %p61
      %p63 = scmp.ne.s32.totalorder %s51, %s52
      %p64 = scmp.eq.s32.totalorder %s21, 1
      %p65 = por %p63, %p64
      %p67 = scmp.ne.s32.totalorder %s52, %s66
      %p68 = scmp.eq.s32.totalorder %s21, 0
      %p69 = por %p67, %p68
      %s71 = sadd.s32 %s70, 1
      %p74 = scmp.eq.s32.totalorder %s15, 1
      %p75 = scmp.ne.s32.totalorder %s70, %s72
      %p76 = scmp.eq.s32.totalorder %s15, 0
      %p77 = por %p75, %p76
      %p78 = scmp.ne.s32.totalorder %s70, %s72
      %p79 = scmp.eq.s32.totalorder %s20, 1
      %p80 = por %p78, %p79
      %p81 = scmp.ne.s32.totalorder %s72, %s73
      %p82 = scmp.eq.s32.totalorder %s20, 0
      %p83 = por %p81, %p82
      %p84 = scmp.ne.s32.totalorder %s72, %s73
      %p85 = scmp.eq.s32.totalorder %s21, 1
      %p86 = por %p84, %p85
      %p88 = scmp.ne.s32.totalorder %s73, %s87
      %p89 = scmp.eq.s32.totalorder %s21, 0
      %p90 = por %p88, %p89
      %s91 = ssub.s32 %s15, %s22
      %p92 = scmp.eq.s32.totalorder %s91, 0
      %s94 = sadd.s32 %s93, 1
      %s95 = scalar_select %p92, %s93, %s94
      %p98 = pneg %p92
      %p99 = scmp.eq.s32.totalorder %s15, 1
      %p100 = por %p98, %p99
      %p101 = scmp.ne.s32.totalorder %s93, %s96
      %p102 = scmp.eq.s32.totalorder %s15, 0
      %p103 = por %p101, %p102
      %p104 = scmp.ne.s32.totalorder %s93, %s96
      %p105 = scmp.eq.s32.totalorder %s20, 1
      %p106 = por %p104, %p105
      %p107 = scmp.ne.s32.totalorder %s96, %s97
      %p108 = scmp.eq.s32.totalorder %s20, 0
      %p109 = por %p107, %p108
      %p110 = scmp.ne.s32.totalorder %s96, %s97
      %p111 = scmp.eq.s32.totalorder %s21, 1
      %p112 = por %p110, %p111
      %p114 = scmp.ne.s32.totalorder %s97, %s113
      %p115 = scmp.eq.s32.totalorder %s21, 0
      %p116 = por %p114, %p115
      %p117 = scmp.le.s32.totalorder 1, %s15
      %p118 = scmp.lt.s32.totalorder %s15, 3
      %p119 = pnand %p117, %p118
      %p120 = pneg %p119
      // Predicated region
      $region9: #{tpu_custom_call.1} parent=5 // pred_check
        _
      $region10: #{tpu_custom_call.1} parent=5 // pred_check_branch
        %122 = sbr.rel (%p119) target = $region12
      $region11: #{tpu_custom_call.1} parent=5 // pred_region
        %s123 = ssub.s32 %s15, 1
        // Predicated region
        $region13: #{tpu_custom_call.1} parent=11 // pred_check
          %p124 = pneg %p62
        $region14: #{tpu_custom_call.1} parent=11 // pred_check_branch
          %126 = sbr.rel (%p124) target = $region16
        $region15: #{tpu_custom_call.1} parent=11 // pred_region
          _
        $region16: #{tpu_custom_call.1} parent=11 // pred_fallthru
          _
        // Predicated region
        $region17: #{tpu_custom_call.1} parent=11 // pred_check
          %p127 = pneg %p83
        $region18: #{tpu_custom_call.1} parent=11 // pred_check_branch
          %129 = sbr.rel (%p127) target = $region20
        $region19: #{tpu_custom_call.1} parent=11 // pred_region
          _
        $region20: #{tpu_custom_call.1} parent=11 // pred_fallthru
          _
      $region12: #{tpu_custom_call.1} parent=5 // pred_fallthru
        _
      %p130 = scmp.lt.s32.totalorder %s15, 2
      // Predicated region
      $region21: #{tpu_custom_call.1} parent=5 // pred_check
        %p131 = pneg %p130
      $region22: #{tpu_custom_call.1} parent=5 // pred_check_branch
        %133 = sbr.rel (%p131) target = $region24
      $region23: #{tpu_custom_call.1} parent=5 // pred_region
        // Predicated region
        $region25: #{tpu_custom_call.1} parent=23 // pred_check
          %p134 = pneg %p35
        $region26: #{tpu_custom_call.1} parent=23 // pred_check_branch
          %136 = sbr.rel (%p134) target = $region28
        $region27: #{tpu_custom_call.1} parent=23 // pred_region
          %s137 = sand.u32 %s25, 1
          %s138 = scalar_lea.sflag [#allocation3], %s137
          %s139 = sand.u32 %s25, 1
          %s140 = smul.addr %s139, 8
          %s141 = scalar_lea.vmem [#allocation2], %s140
          %s143 = ssub.s32 128, 128
          %144 = vsyncadd %s138, %s143
          %s145 = smul.addr %s15, 128
          %s146 = scalar_lea.hbm %s0, %s145
          %s148 = sshll.u32 %s141, 4
          %s149 = int_to_ptr.vmem [resolvable:$true] %s148
          %151 = dma.hbm_to_vmem [thread:$0]  %s146, 128, %s149, %s138
        $region28: #{tpu_custom_call.1} parent=23 // pred_fallthru
          _
      $region24: #{tpu_custom_call.1} parent=5 // pred_fallthru
        _
      %p152 = scmp.le.s32.totalorder 1, %s15
      %p153 = scmp.lt.s32.totalorder %s15, 3
      %p154 = pnand %p152, %p153
      %p155 = pneg %p154
      // Predicated region
      $region29: #{tpu_custom_call.1} parent=5 // pred_check
        _
      $region30: #{tpu_custom_call.1} parent=5 // pred_check_branch
        %157 = sbr.rel (%p154) target = $region32
      $region31: #{tpu_custom_call.1} parent=5 // pred_region
        %s158 = ssub.s32 %s15, 1
        %s159 = sand.u32 %s28, 1
        %s160 = scalar_lea.sflag [#allocation3], %s159
        %s161 = sand.u32 %s28, 1
        %s162 = smul.addr %s161, 8
        %s163 = scalar_lea.vmem [#allocation2], %s162
        // Predicated region
        $region33: #{tpu_custom_call.1} parent=31 // pred_check
          %p164 = pneg %p41
        $region34: #{tpu_custom_call.1} parent=31 // pred_check_branch
          %166 = sbr.rel (%p164) target = $region36
        $region35: #{tpu_custom_call.1} parent=31 // pred_region
          %167 = dma.done %s160, 128
        $region36: #{tpu_custom_call.1} parent=31 // pred_fallthru
          _
        %s168 = sand.u32 %s28, 1
        %s169 = scalar_lea.sflag [#allocation3], %s168
        %s170 = sand.u32 %s28, 1
        %s171 = smul.addr %s170, 8
        %s172 = scalar_lea.vmem [#allocation2], %s171
        %p173 = pneg %p41
        %p174 = pneg %p38
        %p175 = pneg %p62
        %p176 = pneg %p59
        %p177 = pneg %p83
        %p178 = pneg %p80
        %p179 = pneg %p109
        %p180 = pneg %p106
        %s181 = sand.u32 %s96, 1
        %s182 = scalar_lea.sflag [#allocation4], %s181
        %s183 = sand.u32 %s96, 1
        %s184 = smul.addr %s183, 8
        %s185 = scalar_lea.vmem [#allocation5], %s184
        %v186 = vld [vmem:[%s163] sm:$0xff]
        %v187 = vld [vmem:[%s1] sm:$0x1]
        %188 = vadd.xlane.f32.xlu0 %v186
        %v189 = vpop.xlane.xlu0 %188
        %v190 = vmul.f32 %v189, 0.0078125
        %v191 = vsub.f32 %v186, %v190
        %v192 = vmul.f32 %v191, %v191
        %193 = vadd.xlane.f32.xlu0 %v192
        %v194 = vpop.xlane.xlu0 %193
        %v195 = vmul.f32 %v194, 0.0078125
        %v196 = vadd.f32 %v195, 1e-05
        %v197 = vrsqrt.pop %v196
        %v198 = vmul.f32 %v191, %v197
        %v200 = vlaneseq
        %v201 = vshrl.u32 %v200, 7
        %v202 = vsub.s32 0, %v201
        %v203 = vrot.slane %v187, %v202
        %v205 = vmul.f32 %v198, %v203
        %v206 = vld [vmem:[%s2] sm:$0x1]
        %v208 = vlaneseq
        %v209 = vshrl.u32 %v208, 7
        %v210 = vsub.s32 0, %v209
        %v211 = vrot.slane %v206, %v210
        %v213 = vadd.f32 %v205, %v211
        %214 = vst [vmem:[%s185] sm:$0xff] %v213
        %s215 = sand.u32 %s96, 1
        %s216 = scalar_lea.sflag [#allocation4], %s215
        %s217 = sand.u32 %s96, 1
        %s218 = smul.addr %s217, 8
        %s219 = scalar_lea.vmem [#allocation5], %s218
        // Predicated region
        $region37: #{tpu_custom_call.1} parent=31 // pred_check
          %p220 = pneg %p106
        $region38: #{tpu_custom_call.1} parent=31 // pred_check_branch
          %222 = sbr.rel (%p220) target = $region40
        $region39: #{tpu_custom_call.1} parent=31 // pred_region
          %s224 = ssub.s32 128, 128
          %225 = vsyncadd %s216, %s224
          %s226 = smul.addr %s20, 128
          %s227 = scalar_lea.hbm %s3, %s226
          %s229 = sshll.u32 %s219, 4
          %s230 = int_to_ptr.vmem [resolvable:$true] %s229
          %232 = dma.vmem_to_hbm [thread:$0]  %s230, 128, %s227, %s216
        $region40: #{tpu_custom_call.1} parent=31 // pred_fallthru
          _
      $region32: #{tpu_custom_call.1} parent=5 // pred_fallthru
        _
      %p233 = scmp.le.s32.totalorder 2, %s15
      // Predicated region
      $region41: #{tpu_custom_call.1} parent=5 // pred_check
        %p234 = pneg %p233
      $region42: #{tpu_custom_call.1} parent=5 // pred_check_branch
        %236 = sbr.rel (%p234) target = $region44
      $region43: #{tpu_custom_call.1} parent=5 // pred_region
        %s237 = ssub.s32 %s15, 2
        // Predicated region
        $region45: #{tpu_custom_call.1} parent=43 // pred_check
          %p238 = pneg %p112
        $region46: #{tpu_custom_call.1} parent=43 // pred_check_branch
          %240 = sbr.rel (%p238) target = $region48
        $region47: #{tpu_custom_call.1} parent=43 // pred_region
          %s241 = sand.u32 %s97, 1
          %s242 = scalar_lea.sflag [#allocation4], %s241
          %s243 = sand.u32 %s97, 1
          %s244 = smul.addr %s243, 8
          %s245 = scalar_lea.vmem [#allocation5], %s244
          %246 = dma.done %s242, 128
        $region48: #{tpu_custom_call.1} parent=43 // pred_fallthru
          _
      $region44: #{tpu_custom_call.1} parent=5 // pred_fallthru
        _
    $region6: #{tpu_custom_call.1} parent=1 // loop_footer
      %s19 = sadd.s32 1, %s15
    $region7: #{tpu_custom_call.1} parent=1 // loop_footer_branch
      %14 = sbr.rel target = $region3
    $region8: #{tpu_custom_call.1} parent=1 // loop_exit
      _
    %247 = vsyncpa [#allocation3], 1
    %s248 = scalar_lea.sflag [#allocation3], 1
    %249 = vsyncpa %s248, 1
    %250 = vsyncpa [#allocation4], 1
    %s251 = scalar_lea.sflag [#allocation4], 1
    %252 = vsyncpa %s251, 1

</llo_original>
